<compile_context>
chip_gen: v7x
topology: tpu7x:2x2x1
jax: 0.10.0
libtpu: 0.0.40
codegen_flags: <defaults>
</compile_context>

<pallas_src>
import functools

import jax
import jax.numpy as jnp
from jax import lax
from jax.experimental import pallas as pl
from jax.experimental.pallas import tpu as pltpu

_PAIR_BLOCK_BUDGET = 12 << 20   # bytes per (probs block + target block); 2 buffers in flight
_VMEM_LIMIT = 48 << 20          # leaves headroom under v7x's 64 MiB physical VMEM
_MAX_ROW_TILE = 256


def _round_up(x, m):
    return -(-x // m) * m


def _cdiv(a, b):
    return -(-a // b)


def _plan_tiles(nc, hw, probs_dtype, target_dtype):
    """Static (trace-time) tiling plan: row/col tiles, padded extents, splits."""
    p_bytes = jnp.dtype(probs_dtype).itemsize
    t_bytes = jnp.dtype(target_dtype).itemsize

    # Sublane-packing-friendly row alignment (8 for 4B, 16 for 2B, 32 for 1B
    # dtypes), honored only when the implied row padding stays <= 12.5%
    # (padding rows costs real HBM traffic on BOTH inputs).
    pref = max(8, 32 // p_bytes, 32 // t_bytes)
    align = 8
    for cand in (16, 32):
        if cand <= pref and (_round_up(nc, cand) - nc) * 8 <= nc:
            align = cand

    row_blocks = _cdiv(_round_up(nc, align), _MAX_ROW_TILE)
    row_tile = _round_up(_cdiv(nc, row_blocks), align)
    nc_pad = row_tile * row_blocks

    # Column tile from a BYTE budget over both inputs' actual dtypes.
    pair_bpe = p_bytes + t_bytes
    hw128 = _round_up(hw, 128)
    col_cap = max(128, (_PAIR_BLOCK_BUDGET // (row_tile * pair_bpe)) // 128 * 128)
    col_blocks = _cdiv(hw128, col_cap)

    # v7x megacore: with a single row block the only "parallel" axis would
    # have extent 1 -> split the spatial reduction 2-way (partials summed in
    # the wrapper).  Harmless on single-TC v5e/v6e.
    splits = 2 if (row_blocks < 2 and col_blocks >= 2) else 1
    if splits == 2 and col_blocks % 2:
        col_blocks += 1

    col_tile = _round_up(_cdiv(hw128, col_blocks), 128)
    hw_pad = col_tile * col_blocks
    return row_tile, nc_pad, col_tile, hw_pad, splits, col_blocks


def _dice_bce_stats_kernel(p_ref, t_ref, out_ref,
                           pt_acc, sp_acc, st_acc, a_acc, b_acc, mx_acc):
    """Accumulate scale-independent per-row stats; pack 6 stats into 128 lanes."""
    j = pl.program_id(2)

    @pl.when(j == 0)
    def _():
        pt_acc[...] = jnp.zeros_like(pt_acc)
        sp_acc[...] = jnp.zeros_like(sp_acc)
        st_acc[...] = jnp.zeros_like(st_acc)
        a_acc[...] = jnp.zeros_like(a_acc)
        b_acc[...] = jnp.zeros_like(b_acc)
        # Targets are non-negative in this loss; zero init matches what zero
        # padding contributes and cannot flip the (max > 1) decision.
        mx_acc[...] = jnp.zeros_like(mx_acc)

    p = p_ref[...].astype(jnp.float32)
    t = t_ref[...].astype(jnp.float32)          # RAW target (possibly 0..255)

    # torch.binary_cross_entropy clamps log terms at -100; reproduce that.
    log_p = jnp.maximum(jnp.log(p), -100.0)
    log_1mp = jnp.maximum(jnp.log(1.0 - p), -100.0)

    pt_acc[...] += jnp.sum(p * t, axis=-1, keepdims=True)
    sp_acc[...] += jnp.sum(p, axis=-1, keepdims=True)
    st_acc[...] += jnp.sum(t, axis=-1, keepdims=True)
    a_acc[...] += jnp.sum(t * (log_p - log_1mp), axis=-1, keepdims=True)
    b_acc[...] += jnp.sum(log_1mp, axis=-1, keepdims=True)
    mx_acc[...] = jnp.maximum(mx_acc[...], jnp.max(t, axis=-1, keepdims=True))

    @pl.when(j == pl.num_programs(2) - 1)
    def _():
        # Single unmasked, lane-dense (row_tile, 128) output store per row block.
        lane = lax.broadcasted_iota(jnp.int32, out_ref.shape, 1)
        out_ref[...] = jnp.where(
            lane == 0, pt_acc[...],
            jnp.where(lane == 1, sp_acc[...],
                      jnp.where(lane == 2, st_acc[...],
                                jnp.where(lane == 3, a_acc[...],
                                          jnp.where(lane == 4, b_acc[...],
                                                    jnp.where(lane == 5, mx_acc[...], 0.0))))))


def _row_stats(probs_2d, target_2d, row_tile, col_tile, splits, col_blocks):
    nc_pad, hw_pad = probs_2d.shape
    row_blocks = nc_pad // row_tile
    cols_per_split = col_blocks // splits
    grid = (splits, row_blocks, cols_per_split)

    in_spec = pl.BlockSpec(
        (row_tile, col_tile), lambda s, i, j: (i, s * cols_per_split + j))
    out_spec = pl.BlockSpec((None, row_tile, 128), lambda s, i, j: (s, i, 0))

    return pl.pallas_call(
        _dice_bce_stats_kernel,
        out_shape=jax.ShapeDtypeStruct((splits, nc_pad, 128), jnp.float32),
        grid_spec=pltpu.PrefetchScalarGridSpec(
            num_scalar_prefetch=0,
            grid=grid,
            in_specs=[in_spec, in_spec],
            out_specs=out_spec,
            scratch_shapes=[pltpu.VMEM((row_tile, 1), jnp.float32)] * 6,
        ),
        compiler_params=pltpu.CompilerParams(
            dimension_semantics=("parallel", "parallel", "arbitrary"),
            vmem_limit_bytes=_VMEM_LIMIT,
        ),
    )(probs_2d, target_2d)


@functools.partial(jax.jit, static_argnames=("dice_w",))
def dice_bce_loss(probs, target, dice_w=0.5):
    """JAX/Pallas equivalent of DiceBCELoss.forward.

    probs:  (N, C, H, W) float, values in (0, 1)
    target: (N, C, H, W) or (N, H, W), any numeric dtype; possibly in [0, 255]
    """
    if target.ndim == 3:
        target = target[:, None, :, :]
    if target.shape != probs.shape:
        # PyTorch's F.binary_cross_entropy requires matching shapes, so this
        # only triggers on inputs the original module could not accept; the
        # supported C==1 path above is a free reshape (no HBM copy).
        target = jnp.broadcast_to(target, probs.shape)

    n, c, h, w = probs.shape
    nc, hw = n * c, h * w
    probs_2d = probs.reshape(nc, hw)
    target_2d = target.reshape(nc, hw)

    row_tile, nc_pad, col_tile, hw_pad, splits, col_blocks = _plan_tiles(
        nc, hw, probs.dtype, target.dtype)
    if nc_pad != nc or hw_pad != hw:
        # Zero padding is loss-neutral: p=0, t=0 contribute 0 to every
        # accumulated stat (log(1-0)=0, the t*log terms vanish with the -100
        # clamp, and the running max is unaffected for the >1 decision).
        probs_2d = jnp.pad(probs_2d, ((0, nc_pad - nc), (0, hw_pad - hw)))
        target_2d = jnp.pad(target_2d, ((0, nc_pad - nc), (0, hw_pad - hw)))

    packed = _row_stats(probs_2d, target_2d, row_tile, col_tile, splits, col_blocks)
    stats = packed[:, :nc, :6]                       # (splits, valid rows, 6)

    pt_raw = jnp.sum(stats[..., 0], axis=0)          # sum(p * t_raw)   per row
    sum_p = jnp.sum(stats[..., 1], axis=0)           # sum(p)           per row
    sum_t = jnp.sum(stats[..., 2], axis=0)           # sum(t_raw)       per row
    a = jnp.sum(stats[..., 3], axis=0)               # sum(t_raw*(log_p-log_1mp))
    b = jnp.sum(stats[..., 4], axis=0)               # sum(log_1mp)     per row
    t_max = jnp.max(stats[..., 5])                   # global max(target)

    # `if target.max() > 1: target = target / 255.0`, applied to the stats.
    s = jnp.where(t_max > 1.0, jnp.float32(1.0 / 255.0), jnp.float32(1.0))

    dice = 1.0 - (2.0 * s * pt_raw + 1.0) / (sum_p + s * sum_t + 1.0)
    bce = jnp.sum(-(s * a + b)) / (n * c * h * w)
    return dice_w * jnp.mean(dice) + (1.0 - dice_w) * bce


def _reference_loss(probs, target, dice_w=0.5):
    t = target.astype(jnp.float32)
    t = jnp.where(jnp.max(t) > 1.0, t / 255.0, t)
    if t.ndim == 3:
        t = t[:, None, :, :]
    t = jnp.broadcast_to(t, probs.shape)
    p = probs.astype(jnp.float32)
    logp = jnp.maximum(jnp.log(p), -100.0)
    log1mp = jnp.maximum(jnp.log(1.0 - p), -100.0)
    bce = jnp.mean(-(t * logp + (1.0 - t) * log1mp))
    dice = 1.0 - (2.0 * jnp.sum(p * t, axis=(2, 3)) + 1.0) / (
        jnp.sum(p + t, axis=(2, 3)) + 1.0)
    return dice_w * jnp.mean(dice) + (1.0 - dice_w) * bce


if __name__ == "__main__":
    key = jax.random.PRNGKey(0)
    k1, k2, k3, k4 = jax.random.split(key, 4)

    N, C, H, W = 2, 4, 16, 16
    probs = jax.nn.sigmoid(jax.random.normal(k1, (N, C, H, W), jnp.float32))

    # Case 1: float target already in {0, 1}.
    target_f32 = (jax.random.uniform(k2, (N, C, H, W)) > 0.5).astype(jnp.float32)
    loss1 = dice_bce_loss(probs, target_f32, dice_w=0.5)
    jax.block_until_ready(loss1)
    ref1 = _reference_loss(probs, target_f32, dice_w=0.5)
    assert jnp.allclose(loss1, ref1, rtol=1e-4, atol=1e-5), (loss1, ref1)

    # Case 2: uint8 target in {0, 255} -> exercises the scale-free stats + /255 combine.
    target_u8 = (target_f32 * 255.0).astype(jnp.uint8)
    loss2 = dice_bce_loss(probs, target_u8, dice_w=0.5)
    jax.block_until_ready(loss2)
    ref2 = _reference_loss(probs, target_u8, dice_w=0.5)
    assert jnp.allclose(loss2, ref2, rtol=1e-4, atol=1e-5), (loss2, ref2)

    # Case 3: (N, H, W) target + non-(8,128)-aligned spatial -> exercises the
    # unsqueeze path and the loss-neutral zero padding.
    N3, C3, H3, W3 = 2, 1, 10, 10
    probs3 = jax.nn.sigmoid(jax.random.normal(k3, (N3, C3, H3, W3), jnp.float32))
    target3 = (jax.random.uniform(k4, (N3, H3, W3)) > 0.5).astype(jnp.float32)
    loss3 = dice_bce_loss(probs3, target3, dice_w=0.25)
    jax.block_until_ready(loss3)
    ref3 = _reference_loss(probs3, target3, dice_w=0.25)
    assert jnp.allclose(loss3, ref3, rtol=1e-4, atol=1e-5), (loss3, ref3)

    print("KERNEL_OK")
</pallas_src>

<mosaic_0001>
module attributes {stable_mosaic.version = 11 : i64} {
  func.func @_dice_bce_stats_kernel(%arg0: i32, %arg1: i32, %arg2: i32, %arg3: memref<8x256xf32, #tpu.memory_space<vmem>>, %arg4: memref<8x256xf32, #tpu.memory_space<vmem>>, %arg5: memref<1x8x128xf32, #tpu.memory_space<vmem>>, %arg6: memref<8x1xf32, #tpu.memory_space<vmem>>, %arg7: memref<8x1xf32, #tpu.memory_space<vmem>>, %arg8: memref<8x1xf32, #tpu.memory_space<vmem>>, %arg9: memref<8x1xf32, #tpu.memory_space<vmem>>, %arg10: memref<8x1xf32, #tpu.memory_space<vmem>>, %arg11: memref<8x1xf32, #tpu.memory_space<vmem>>) attributes {dimension_semantics = [#tpu.dimension_semantics<parallel>, #tpu.dimension_semantics<parallel>, #tpu.dimension_semantics<arbitrary>], iteration_bounds = array<i64: 1, 1, 1>, scalar_prefetch = 0 : i64, scratch_operands = 6 : i64, tpu.core_type = #tpu.core_type<tc>, window_params = [{transform_indices = @transform_0, window_bounds = array<i64: 8, 256>}, {transform_indices = @transform_1, window_bounds = array<i64: 8, 256>}, {transform_indices = @transform_2, window_bounds = array<i64: 1, 8, 128>}]} {
    %c0_i32 = arith.constant 0 : i32
    %0 = arith.cmpi eq, %arg2, %c0_i32 : i32
    %1 = arith.extui %0 : i1 to i32
    %c0_i32_0 = arith.constant 0 : i32
    %2 = arith.cmpi ne, %1, %c0_i32_0 : i32
    scf.if %2 {
      %cst_38 = arith.constant 0.000000e+00 : f32
      %49 = vector.broadcast %cst_38 : f32 to vector<8x1xf32>
      %c0_39 = arith.constant 0 : index
      %c0_40 = arith.constant 0 : index
      %50 = vector.load %arg6[%c0_39, %c0_40] : memref<8x1xf32, #tpu.memory_space<vmem>>, vector<8x1xf32>
      tpu.vector_store %arg6[%c0_39, %c0_40], %49 {strides = array<i32>} : memref<8x1xf32, #tpu.memory_space<vmem>>, vector<8x1xf32>,
      %cst_41 = arith.constant 0.000000e+00 : f32
      %51 = vector.broadcast %cst_41 : f32 to vector<8x1xf32>
      %c0_42 = arith.constant 0 : index
      %c0_43 = arith.constant 0 : index
      %52 = vector.load %arg7[%c0_42, %c0_43] : memref<8x1xf32, #tpu.memory_space<vmem>>, vector<8x1xf32>
      tpu.vector_store %arg7[%c0_42, %c0_43], %51 {strides = array<i32>} : memref<8x1xf32, #tpu.memory_space<vmem>>, vector<8x1xf32>,
      %cst_44 = arith.constant 0.000000e+00 : f32
      %53 = vector.broadcast %cst_44 : f32 to vector<8x1xf32>
      %c0_45 = arith.constant 0 : index
      %c0_46 = arith.constant 0 : index
      %54 = vector.load %arg8[%c0_45, %c0_46] : memref<8x1xf32, #tpu.memory_space<vmem>>, vector<8x1xf32>
      tpu.vector_store %arg8[%c0_45, %c0_46], %53 {strides = array<i32>} : memref<8x1xf32, #tpu.memory_space<vmem>>, vector<8x1xf32>,
      %cst_47 = arith.constant 0.000000e+00 : f32
      %55 = vector.broadcast %cst_47 : f32 to vector<8x1xf32>
      %c0_48 = arith.constant 0 : index
      %c0_49 = arith.constant 0 : index
      %56 = vector.load %arg9[%c0_48, %c0_49] : memref<8x1xf32, #tpu.memory_space<vmem>>, vector<8x1xf32>
      tpu.vector_store %arg9[%c0_48, %c0_49], %55 {strides = array<i32>} : memref<8x1xf32, #tpu.memory_space<vmem>>, vector<8x1xf32>,
      %cst_50 = arith.constant 0.000000e+00 : f32
      %57 = vector.broadcast %cst_50 : f32 to vector<8x1xf32>
      %c0_51 = arith.constant 0 : index
      %c0_52 = arith.constant 0 : index
      %58 = vector.load %arg10[%c0_51, %c0_52] : memref<8x1xf32, #tpu.memory_space<vmem>>, vector<8x1xf32>
      tpu.vector_store %arg10[%c0_51, %c0_52], %57 {strides = array<i32>} : memref<8x1xf32, #tpu.memory_space<vmem>>, vector<8x1xf32>,
      %cst_53 = arith.constant 0.000000e+00 : f32
      %59 = vector.broadcast %cst_53 : f32 to vector<8x1xf32>
      %c0_54 = arith.constant 0 : index
      %c0_55 = arith.constant 0 : index
      %60 = vector.load %arg11[%c0_54, %c0_55] : memref<8x1xf32, #tpu.memory_space<vmem>>, vector<8x1xf32>
      tpu.vector_store %arg11[%c0_54, %c0_55], %59 {strides = array<i32>} : memref<8x1xf32, #tpu.memory_space<vmem>>, vector<8x1xf32>,
    } else {
    }
    %c0 = arith.constant 0 : index
    %c0_1 = arith.constant 0 : index
    %3 = vector.load %arg3[%c0, %c0_1] : memref<8x256xf32, #tpu.memory_space<vmem>>, vector<8x256xf32>
    %c0_2 = arith.constant 0 : index
    %c0_3 = arith.constant 0 : index
    %4 = vector.load %arg4[%c0_2, %c0_3] : memref<8x256xf32, #tpu.memory_space<vmem>>, vector<8x256xf32>
    %5 = math.log %3 : vector<8x256xf32>
    %cst = arith.constant -1.000000e+02 : f32
    %6 = vector.broadcast %cst : f32 to vector<8x256xf32>
    %7 = arith.maximumf %5, %6 : vector<8x256xf32>
    %cst_4 = arith.constant 1.000000e+00 : f32
    %8 = vector.broadcast %cst_4 : f32 to vector<8x256xf32>
    %9 = arith.subf %8, %3 : vector<8x256xf32>
    %10 = math.log %9 : vector<8x256xf32>
    %cst_5 = arith.constant -1.000000e+02 : f32
    %11 = vector.broadcast %cst_5 : f32 to vector<8x256xf32>
    %12 = arith.maximumf %10, %11 : vector<8x256xf32>
    %c0_6 = arith.constant 0 : index
    %c0_7 = arith.constant 0 : index
    %13 = vector.load %arg6[%c0_6, %c0_7] : memref<8x1xf32, #tpu.memory_space<vmem>>, vector<8x1xf32>
    %14 = arith.mulf %3, %4 : vector<8x256xf32>
    %cst_8 = arith.constant dense<0.000000e+00> : vector<8xf32>
    %15 = vector.multi_reduction <add>, %14, %cst_8 [1] : vector<8x256xf32> to vector<8xf32>
    %16 = vector.shape_cast %15 : vector<8xf32> to vector<8x1xf32>
    %17 = arith.addf %13, %16 : vector<8x1xf32>
    %c0_9 = arith.constant 0 : index
    %c0_10 = arith.constant 0 : index
    %18 = vector.load %arg6[%c0_9, %c0_10] : memref<8x1xf32, #tpu.memory_space<vmem>>, vector<8x1xf32>
    tpu.vector_store %arg6[%c0_9, %c0_10], %17 {strides = array<i32>} : memref<8x1xf32, #tpu.memory_space<vmem>>, vector<8x1xf32>,
    %c0_11 = arith.constant 0 : index
    %c0_12 = arith.constant 0 : index
    %19 = vector.load %arg7[%c0_11, %c0_12] : memref<8x1xf32, #tpu.memory_space<vmem>>, vector<8x1xf32>
    %cst_13 = arith.constant dense<0.000000e+00> : vector<8xf32>
    %20 = vector.multi_reduction <add>, %3, %cst_13 [1] : vector<8x256xf32> to vector<8xf32>
    %21 = vector.shape_cast %20 : vector<8xf32> to vector<8x1xf32>
    %22 = arith.addf %19, %21 : vector<8x1xf32>
    %c0_14 = arith.constant 0 : index
    %c0_15 = arith.constant 0 : index
    %23 = vector.load %arg7[%c0_14, %c0_15] : memref<8x1xf32, #tpu.memory_space<vmem>>, vector<8x1xf32>
    tpu.vector_store %arg7[%c0_14, %c0_15], %22 {strides = array<i32>} : memref<8x1xf32, #tpu.memory_space<vmem>>, vector<8x1xf32>,
    %c0_16 = arith.constant 0 : index
    %c0_17 = arith.constant 0 : index
    %24 = vector.load %arg8[%c0_16, %c0_17] : memref<8x1xf32, #tpu.memory_space<vmem>>, vector<8x1xf32>
    %cst_18 = arith.constant dense<0.000000e+00> : vector<8xf32>
    %25 = vector.multi_reduction <add>, %4, %cst_18 [1] : vector<8x256xf32> to vector<8xf32>
    %26 = vector.shape_cast %25 : vector<8xf32> to vector<8x1xf32>
    %27 = arith.addf %24, %26 : vector<8x1xf32>
    %c0_19 = arith.constant 0 : index
    %c0_20 = arith.constant 0 : index
    %28 = vector.load %arg8[%c0_19, %c0_20] : memref<8x1xf32, #tpu.memory_space<vmem>>, vector<8x1xf32>
    tpu.vector_store %arg8[%c0_19, %c0_20], %27 {strides = array<i32>} : memref<8x1xf32, #tpu.memory_space<vmem>>, vector<8x1xf32>,
    %c0_21 = arith.constant 0 : index
    %c0_22 = arith.constant 0 : index
    %29 = vector.load %arg9[%c0_21, %c0_22] : memref<8x1xf32, #tpu.memory_space<vmem>>, vector<8x1xf32>
    %30 = arith.subf %7, %12 : vector<8x256xf32>
    %31 = arith.mulf %4, %30 : vector<8x256xf32>
    %cst_23 = arith.constant dense<0.000000e+00> : vector<8xf32>
    %32 = vector.multi_reduction <add>, %31, %cst_23 [1] : vector<8x256xf32> to vector<8xf32>
    %33 = vector.shape_cast %32 : vector<8xf32> to vector<8x1xf32>
    %34 = arith.addf %29, %33 : vector<8x1xf32>
    %c0_24 = arith.constant 0 : index
    %c0_25 = arith.constant 0 : index
    %35 = vector.load %arg9[%c0_24, %c0_25] : memref<8x1xf32, #tpu.memory_space<vmem>>, vector<8x1xf32>
    tpu.vector_store %arg9[%c0_24, %c0_25], %34 {strides = array<i32>} : memref<8x1xf32, #tpu.memory_space<vmem>>, vector<8x1xf32>,
    %c0_26 = arith.constant 0 : index
    %c0_27 = arith.constant 0 : index
    %36 = vector.load %arg10[%c0_26, %c0_27] : memref<8x1xf32, #tpu.memory_space<vmem>>, vector<8x1xf32>
    %cst_28 = arith.constant dense<0.000000e+00> : vector<8xf32>
    %37 = vector.multi_reduction <add>, %12, %cst_28 [1] : vector<8x256xf32> to vector<8xf32>
    %38 = vector.shape_cast %37 : vector<8xf32> to vector<8x1xf32>
    %39 = arith.addf %36, %38 : vector<8x1xf32>
    %c0_29 = arith.constant 0 : index
    %c0_30 = arith.constant 0 : index
    %40 = vector.load %arg10[%c0_29, %c0_30] : memref<8x1xf32, #tpu.memory_space<vmem>>, vector<8x1xf32>
    tpu.vector_store %arg10[%c0_29, %c0_30], %39 {strides = array<i32>} : memref<8x1xf32, #tpu.memory_space<vmem>>, vector<8x1xf32>,
    %c0_31 = arith.constant 0 : index
    %c0_32 = arith.constant 0 : index
    %41 = vector.load %arg11[%c0_31, %c0_32] : memref<8x1xf32, #tpu.memory_space<vmem>>, vector<8x1xf32>
    %cst_33 = arith.constant dense<0xFF800000> : vector<8xf32>
    %42 = vector.multi_reduction <maximumf>, %4, %cst_33 [1] : vector<8x256xf32> to vector<8xf32>
    %43 = vector.shape_cast %42 : vector<8xf32> to vector<8x1xf32>
    %44 = arith.maximumf %41, %43 : vector<8x1xf32>
    %c0_34 = arith.constant 0 : index
    %c0_35 = arith.constant 0 : index
    %45 = vector.load %arg11[%c0_34, %c0_35] : memref<8x1xf32, #tpu.memory_space<vmem>>, vector<8x1xf32>
    tpu.vector_store %arg11[%c0_34, %c0_35], %44 {strides = array<i32>} : memref<8x1xf32, #tpu.memory_space<vmem>>, vector<8x1xf32>,
    %c0_i32_36 = arith.constant 0 : i32
    %46 = arith.cmpi eq, %arg2, %c0_i32_36 : i32
    %47 = arith.extui %46 : i1 to i32
    %c0_i32_37 = arith.constant 0 : i32
    %48 = arith.cmpi ne, %47, %c0_i32_37 : i32
    scf.if %48 {
      %49 = tpu.iota {dimensions = array<i32: 1>} : vector<8x128xi32>
      %c0_i32_38 = arith.constant 0 : i32
      %50 = vector.broadcast %c0_i32_38 : i32 to vector<8x128xi32>
      %51 = arith.cmpi eq, %49, %50 : vector<8x128xi32>
      %c0_39 = arith.constant 0 : index
      %c0_40 = arith.constant 0 : index
      %52 = vector.load %arg6[%c0_39, %c0_40] : memref<8x1xf32, #tpu.memory_space<vmem>>, vector<8x1xf32>
      %c1_i32 = arith.constant 1 : i32
      %53 = vector.broadcast %c1_i32 : i32 to vector<8x128xi32>
      %54 = arith.cmpi eq, %49, %53 : vector<8x128xi32>
      %c0_41 = arith.constant 0 : index
      %c0_42 = arith.constant 0 : index
      %55 = vector.load %arg7[%c0_41, %c0_42] : memref<8x1xf32, #tpu.memory_space<vmem>>, vector<8x1xf32>
      %c2_i32 = arith.constant 2 : i32
      %56 = vector.broadcast %c2_i32 : i32 to vector<8x128xi32>
      %57 = arith.cmpi eq, %49, %56 : vector<8x128xi32>
      %c0_43 = arith.constant 0 : index
      %c0_44 = arith.constant 0 : index
      %58 = vector.load %arg8[%c0_43, %c0_44] : memref<8x1xf32, #tpu.memory_space<vmem>>, vector<8x1xf32>
      %c3_i32 = arith.constant 3 : i32
      %59 = vector.broadcast %c3_i32 : i32 to vector<8x128xi32>
      %60 = arith.cmpi eq, %49, %59 : vector<8x128xi32>
      %c0_45 = arith.constant 0 : index
      %c0_46 = arith.constant 0 : index
      %61 = vector.load %arg9[%c0_45, %c0_46] : memref<8x1xf32, #tpu.memory_space<vmem>>, vector<8x1xf32>
      %c4_i32 = arith.constant 4 : i32
      %62 = vector.broadcast %c4_i32 : i32 to vector<8x128xi32>
      %63 = arith.cmpi eq, %49, %62 : vector<8x128xi32>
      %c0_47 = arith.constant 0 : index
      %c0_48 = arith.constant 0 : index
      %64 = vector.load %arg10[%c0_47, %c0_48] : memref<8x1xf32, #tpu.memory_space<vmem>>, vector<8x1xf32>
      %c5_i32 = arith.constant 5 : i32
      %65 = vector.broadcast %c5_i32 : i32 to vector<8x128xi32>
      %66 = arith.cmpi eq, %49, %65 : vector<8x128xi32>
      %c0_49 = arith.constant 0 : index
      %c0_50 = arith.constant 0 : index
      %67 = vector.load %arg11[%c0_49, %c0_50] : memref<8x1xf32, #tpu.memory_space<vmem>>, vector<8x1xf32>
      %cst_51 = arith.constant 0.000000e+00 : f32
      %68 = vector.shape_cast %67 : vector<8x1xf32> to vector<8x1xf32>
      %69 = vector.broadcast %68 : vector<8x1xf32> to vector<8x128xf32>
      %70 = vector.broadcast %cst_51 : f32 to vector<8x128xf32>
      %71 = arith.select %66, %69, %70 : vector<8x128xi1>, vector<8x128xf32>
      %72 = vector.shape_cast %64 : vector<8x1xf32> to vector<8x1xf32>
      %73 = vector.broadcast %72 : vector<8x1xf32> to vector<8x128xf32>
      %74 = arith.select %63, %73, %71 : vector<8x128xi1>, vector<8x128xf32>
      %75 = vector.shape_cast %61 : vector<8x1xf32> to vector<8x1xf32>
      %76 = vector.broadcast %75 : vector<8x1xf32> to vector<8x128xf32>
      %77 = arith.select %60, %76, %74 : vector<8x128xi1>, vector<8x128xf32>
      %78 = vector.shape_cast %58 : vector<8x1xf32> to vector<8x1xf32>
      %79 = vector.broadcast %78 : vector<8x1xf32> to vector<8x128xf32>
      %80 = arith.select %57, %79, %77 : vector<8x128xi1>, vector<8x128xf32>
      %81 = vector.shape_cast %55 : vector<8x1xf32> to vector<8x1xf32>
      %82 = vector.broadcast %81 : vector<8x1xf32> to vector<8x128xf32>
      %83 = arith.select %54, %82, %80 : vector<8x128xi1>, vector<8x128xf32>
      %84 = vector.shape_cast %52 : vector<8x1xf32> to vector<8x1xf32>
      %85 = vector.broadcast %84 : vector<8x1xf32> to vector<8x128xf32>
      %86 = arith.select %51, %85, %83 : vector<8x128xi1>, vector<8x128xf32>
      %c0_52 = arith.constant 0 : index
      %c0_53 = arith.constant 0 : index
      %c0_54 = arith.constant 0 : index
      %87 = vector.load %arg5[%c0_52, %c0_53, %c0_54] : memref<1x8x128xf32, #tpu.memory_space<vmem>>, vector<1x8x128xf32>
      %88 = vector.shape_cast %87 : vector<1x8x128xf32> to vector<8x128xf32>
      %89 = vector.shape_cast %86 : vector<8x128xf32> to vector<1x8x128xf32>
      tpu.vector_store %arg5[%c0_52, %c0_53, %c0_54], %89 {strides = array<i32>} : memref<1x8x128xf32, #tpu.memory_space<vmem>>, vector<1x8x128xf32>,
    } else {
    }
    return
  }
  func.func @transform_0(%arg0: i32, %arg1: i32, %arg2: i32) -> (i32, i32) {
    %c1_i32 = arith.constant 1 : i32
    %0 = arith.muli %arg0, %c1_i32 : i32
    %1 = arith.addi %0, %arg2 : i32
    %c0_i32 = arith.constant 0 : i32
    return %arg1, %1 : i32, i32
  }
  func.func @transform_1(%arg0: i32, %arg1: i32, %arg2: i32) -> (i32, i32) {
    %c1_i32 = arith.constant 1 : i32
    %0 = arith.muli %arg0, %c1_i32 : i32
    %1 = arith.addi %0, %arg2 : i32
    %c0_i32 = arith.constant 0 : i32
    return %arg1, %1 : i32, i32
  }
  func.func @transform_2(%arg0: i32, %arg1: i32, %arg2: i32) -> (i32, i32, i32) {
    %c0_i32 = arith.constant 0 : i32
    %c0_i32_0 = arith.constant 0 : i32
    return %arg0, %arg1, %c0_i32 : i32, i32, i32
  }
}

</mosaic_0001>

<llo_original>
// kernel: dice_bce_loss.1
$region0: #{dice_bce_loss.1}
  #allocation0 [shape = 'u32[]', space=smem, size = 0x4, offset = 0x4, fixed_abs, tag = 'smem constant byte address 0x4 - core index']
  #allocation1 [shape = 'u32[144,128]{1,0:T(1,128)}', space=vmem, size = 0x12000, scoped, tag = 'internal scratch']
  #allocation2 [shape = 'f32[8,1]{1,0:T(8,128)}', space=vmem, size = 0x1000, scoped, tag = 'scratch operand']
  #allocation3 [shape = 'f32[8,1]{1,0:T(8,128)}', space=vmem, size = 0x1000, scoped, tag = 'scratch operand']
  #allocation4 [shape = 'f32[8,1]{1,0:T(8,128)}', space=vmem, size = 0x1000, scoped, tag = 'scratch operand']
  #allocation5 [shape = 'f32[8,1]{1,0:T(8,128)}', space=vmem, size = 0x1000, scoped, tag = 'scratch operand']
  #allocation6 [shape = 'f32[8,1]{1,0:T(8,128)}', space=vmem, size = 0x1000, scoped, tag = 'scratch operand']
  #allocation7 [shape = 'f32[8,1]{1,0:T(8,128)}', space=vmem, size = 0x1000, scoped, tag = 'scratch operand']
  %s0 = inlined_call_operand.vmem [shape: f32[8,256], index: 0, kind: input, shape index: {}]
  %s1 = inlined_call_operand.vmem [shape: f32[8,256], index: 1, kind: input, shape index: {}]
  %s2 = inlined_call_operand.vmem [shape: f32[1,8,128], index: 2, kind: output, shape index: {}]
  %s3 = sld [smem:[#allocation0]]
  $region26: #{dice_bce_loss.1} parent=0
    _
  %s5 = ssub.s32 1, %s3
  %s6 = scalar_select 0, %s5, %s3
  // Predicated region
  $region2: #{dice_bce_loss.1} parent=0 // pred_check
    _
  $region3: #{dice_bce_loss.1} parent=0 // pred_check_branch
    %8 = sbr.rel (0) target = $region5
  $region4: #{dice_bce_loss.1} parent=0 // pred_region
    %s9 = sadd.s32 0, 0
    %s10 = smul.u32 2, %s9
    %p11 = scmp.lt.s32.totalorder %s10, 1
    %s12 = scalar_select %p11, %s10, 1
    %s13 = smul.addr %s12, 8
    %s14 = scalar_lea.vmem %s0, %s13
    %s15 = sadd.s32 0, 0
    %s16 = smul.u32 2, %s15
  $region5: #{dice_bce_loss.1} parent=0 // pred_fallthru
    _
  // Predicated region
  $region6: #{dice_bce_loss.1} parent=0 // pred_check
    _
  $region7: #{dice_bce_loss.1} parent=0 // pred_check_branch
    %18 = sbr.rel (0) target = $region9
  $region8: #{dice_bce_loss.1} parent=0 // pred_region
    %s19 = sadd.s32 0, 0
    %s20 = smul.u32 2, %s19
    %p21 = scmp.lt.s32.totalorder %s20, 1
    %s22 = scalar_select %p21, %s20, 1
    %s23 = smul.addr %s22, 8
    %s24 = scalar_lea.vmem %s1, %s23
    %s25 = sadd.s32 0, 0
    %s26 = smul.u32 2, %s25
  $region9: #{dice_bce_loss.1} parent=0 // pred_fallthru
    _
  %s27 = sadd.s32 0, 0
  %s28 = smul.u32 2, %s27
  %p29 = scmp.lt.s32.totalorder %s28, 1
  %s30 = scalar_select %p29, %s28, 1
  %s31 = smul.addr %s30, 8
  %s32 = scalar_lea.vmem %s0, %s31
  %s33 = sadd.s32 0, 0
  %s34 = smul.u32 2, %s33
  %p35 = scmp.lt.s32.totalorder %s34, 1
  %s36 = scalar_select %p35, %s34, 1
  %s37 = smul.addr %s36, 8
  %s38 = scalar_lea.vmem %s1, %s37
  %s39 = sadd.s32 0, 0
  %s40 = smul.u32 2, %s39
  %p41 = scmp.lt.s32.totalorder %s40, 1
  %s42 = scalar_select %p41, %s40, 1
  %s43 = smul.addr %s42, 8
  %s44 = scalar_lea.vmem %s0, %s43
  %s45 = sadd.s32 0, 0
  %s46 = smul.u32 2, %s45
  %s47 = sadd.s32 0, 0
  %s48 = smul.u32 2, %s47
  %p49 = scmp.lt.s32.totalorder %s48, 1
  %s50 = scalar_select %p49, %s48, 1
  %s51 = smul.addr %s50, 8
  %s52 = scalar_lea.vmem %s1, %s51
  %s53 = sadd.s32 0, 0
  %s54 = smul.u32 2, %s53
  %p55 = scmp.eq.s32.totalorder 0, 0
  // Predicated region
  $region10: #{dice_bce_loss.1} parent=0 // pred_check
    %p56 = pneg %p55
  $region11: #{dice_bce_loss.1} parent=0 // pred_check_branch
    %58 = sbr.rel (%p56) target = $region13
  $region12: #{dice_bce_loss.1} parent=0 // pred_region
    %vm59 = vcmask 7168
    %60 = vst.msk [vmem:[#allocation2] sm:$0xff] %vm59, 0.0
    %61 = vst.msk [vmem:[#allocation3] sm:$0xff] %vm59, 0.0
    %62 = vst.msk [vmem:[#allocation4] sm:$0xff] %vm59, 0.0
    %63 = vst.msk [vmem:[#allocation5] sm:$0xff] %vm59, 0.0
    %64 = vst.msk [vmem:[#allocation6] sm:$0xff] %vm59, 0.0
    %65 = vst.msk [vmem:[#allocation7] sm:$0xff] %vm59, 0.0
  $region13: #{dice_bce_loss.1} parent=0 // pred_fallthru
    _
  %v66 = vld [vmem:[%s44] sm:$0xff]
  %v67 = vld [vmem:[%s44 + $0x8] sm:$0xff]
  %v68 = vld [vmem:[%s52] sm:$0xff]
  %v69 = vld [vmem:[%s52 + $0x8] sm:$0xff]
  %v70 = vlog2.pop %v66
  %v71 = vmul.f32 %v70, 0.6931472
  %v72 = vlog2.pop %v67
  %v73 = vmul.f32 %v72, 0.6931472
  %v74 = vmax.f32 %v71, -100.0
  %v75 = vmax.f32 %v73, -100.0
  %v76 = vsub.f32 1.0, %v66
  %v77 = vsub.f32 1.0, %v67
  %v78 = vlog2.pop %v76
  %v79 = vmul.f32 %v78, 0.6931472
  %v80 = vlog2.pop %v77
  %v81 = vmul.f32 %v80, 0.6931472
  %v82 = vmax.f32 %v79, -100.0
  %v83 = vmax.f32 %v81, -100.0
  %v84 = vld [vmem:[#allocation2] sm:$0xff]
  %v85 = vmul.f32 %v66, %v68
  %v86 = vmul.f32 %v67, %v69
  %v87 = vadd.f32 %v85, %v86
  %88 = vadd.xlane.f32.xlu0 %v87
  %v89 = vpop.xlane.xlu0 %88
  %v90 = vadd.f32 %v84, %v89
  %vm91 = vcmask 7168
  %92 = vst.msk [vmem:[#allocation2] sm:$0xff] %vm91, %v90
  %v93 = vld [vmem:[#allocation3] sm:$0xff]
  %v94 = vadd.f32 %v66, %v67
  %95 = vadd.xlane.f32.xlu0 %v94
  %v96 = vpop.xlane.xlu0 %95
  %v97 = vadd.f32 %v93, %v96
  %98 = vst.msk [vmem:[#allocation3] sm:$0xff] %vm91, %v97
  %v99 = vld [vmem:[#allocation4] sm:$0xff]
  %v100 = vadd.f32 %v68, %v69
  %101 = vadd.xlane.f32.xlu0 %v100
  %v102 = vpop.xlane.xlu0 %101
  %v103 = vadd.f32 %v99, %v102
  %104 = vst.msk [vmem:[#allocation4] sm:$0xff] %vm91, %v103
  %v105 = vld [vmem:[#allocation5] sm:$0xff]
  %v106 = vsub.f32 %v74, %v82
  %v107 = vsub.f32 %v75, %v83
  %v108 = vmul.f32 %v68, %v106
  %v109 = vmul.f32 %v69, %v107
  %v110 = vadd.f32 %v108, %v109
  %111 = vadd.xlane.f32.xlu0 %v110
  %v112 = vpop.xlane.xlu0 %111
  %v113 = vadd.f32 %v105, %v112
  %114 = vst.msk [vmem:[#allocation5] sm:$0xff] %vm91, %v113
  %v115 = vld [vmem:[#allocation6] sm:$0xff]
  %v116 = vadd.f32 %v82, %v83
  %117 = vadd.xlane.f32.xlu0 %v116
  %v118 = vpop.xlane.xlu0 %117
  %v119 = vadd.f32 %v115, %v118
  %120 = vst.msk [vmem:[#allocation6] sm:$0xff] %vm91, %v119
  %v121 = vld [vmem:[#allocation7] sm:$0xff]
  %v122 = vmax.f32 %v68, %v69
  %123 = vmax.xlane.f32.xlu0 %v122
  %v124 = vpop.xlane.xlu0 %123
  %v125 = vmax.f32 %v121, %v124
  %126 = vst.msk [vmem:[#allocation7] sm:$0xff] %vm91, %v125
  // Predicated region
  $region14: #{dice_bce_loss.1} parent=0 // pred_check
    %p127 = pneg %p55
  $region15: #{dice_bce_loss.1} parent=0 // pred_check_branch
    %129 = sbr.rel (%p127) target = $region17
  $region16: #{dice_bce_loss.1} parent=0 // pred_region
    %v130 = vlaneseq
    %v131 = vand.u32 %v130, 127
    %vm132 = vcmp.eq.s32.totalorder %v131, 0
    %v133 = vld [vmem:[#allocation2] sm:$0xff]
    %vm134 = vcmp.eq.s32.totalorder %v131, 1
    %v135 = vld [vmem:[#allocation3] sm:$0xff]
    %vm136 = vcmp.eq.s32.totalorder %v131, 2
    %v137 = vld [vmem:[#allocation4] sm:$0xff]
    %vm138 = vcmp.eq.s32.totalorder %v131, 3
    %v139 = vld [vmem:[#allocation5] sm:$0xff]
    %vm140 = vcmp.eq.s32.totalorder %v131, 4
    %v141 = vld [vmem:[#allocation6] sm:$0xff]
    %vm142 = vcmp.eq.s32.totalorder %v131, 5
    %v143 = vld [vmem:[#allocation7] sm:$0xff]
    %145 = vset.pattern.permute.xlu0 0
    %146 = vperm.xlu0 %145, %v143
    %v147 = vpop.permute.xlu0 %146
    %v149 = vsel %vm142, %v147, 0.0
    %151 = vset.pattern.permute.xlu0 0
    %152 = vperm.xlu0 %151, %v141
    %v153 = vpop.permute.xlu0 %152
    %v155 = vsel %vm140, %v153, %v149
    %157 = vset.pattern.permute.xlu0 0
    %158 = vperm.xlu0 %157, %v139
    %v159 = vpop.permute.xlu0 %158
    %v161 = vsel %vm138, %v159, %v155
    %163 = vset.pattern.permute.xlu0 0
    %164 = vperm.xlu0 %163, %v137
    %v165 = vpop.permute.xlu0 %164
    %v167 = vsel %vm136, %v165, %v161
    %169 = vset.pattern.permute.xlu0 0
    %170 = vperm.xlu0 %169, %v135
    %v171 = vpop.permute.xlu0 %170
    %v173 = vsel %vm134, %v171, %v167
    %175 = vset.pattern.permute.xlu0 0
    %176 = vperm.xlu0 %175, %v133
    %v177 = vpop.permute.xlu0 %176
    %v179 = vsel %vm132, %v177, %v173
    %180 = vst [vmem:[%s2] sm:$0xff] %v179
  $region17: #{dice_bce_loss.1} parent=0 // pred_fallthru
    _
  // Predicated region
  $region18: #{dice_bce_loss.1} parent=0 // pred_check
    _
  $region19: #{dice_bce_loss.1} parent=0 // pred_check_branch
    %182 = sbr.rel (0) target = $region21
  $region20: #{dice_bce_loss.1} parent=0 // pred_region
    _
  $region21: #{dice_bce_loss.1} parent=0 // pred_fallthru
    _
  // Predicated region
  $region22: #{dice_bce_loss.1} parent=0 // pred_check
    _
  $region23: #{dice_bce_loss.1} parent=0 // pred_check_branch
    %184 = sbr.rel (0) target = $region25
  $region24: #{dice_bce_loss.1} parent=0 // pred_region
    _
  $region25: #{dice_bce_loss.1} parent=0 // pred_fallthru
    _

</llo_original>
